<compile_context>
chip_gen: v5e
topology: v5e:2x2
jax: 0.10.0
libtpu: 0.0.40
codegen_flags: <defaults>
</compile_context>

<pallas_src>
import math

import jax
import jax.numpy as jnp
from jax.experimental import pallas as pl
from jax.experimental.pallas import tpu as pltpu


def _decoder_kernel(x_ref, w_ref, b_ref, o_ref):
    # x_ref: [TB, S] (VMEM), w_ref: [1, S] (VMEM, w1 - w0), b_ref: [1, 1] (SMEM, b1 - b0)
    x = x_ref[...]
    w = w_ref[...]
    d = jnp.sum(x * w, axis=-1, keepdims=True) + b_ref[0, 0]        # [TB, 1]
    # stable softplus(d) = max(d, 0) + log1p(exp(-|d|))
    sp = jnp.maximum(d, 0.0) + jnp.log1p(jnp.exp(-jnp.abs(d)))      # softplus(d)
    # log_softmax: out0 = -softplus(d); out1 = -softplus(-d) = d - softplus(d)
    o_ref[...] = jnp.concatenate([-sp, d - sp], axis=-1).astype(o_ref.dtype)


def _round_up(n, m):
    return ((n + m - 1) // m) * m


def epoct_binary_decoder(x, weight, bias, block_rows=1024):
    """x: [B, STATE_SIZE] f32; weight: [STATE_SIZE, 2] f32; bias: [2] f32.

    Returns log_softmax(x @ weight + bias, axis=1) as [B, 2] f32.
    """
    B, S = x.shape
    assert weight.shape == (S, 2)
    assert bias.shape == (2,)

    x = x.astype(jnp.float32)
    w_diff = (weight[:, 1] - weight[:, 0]).reshape(1, S).astype(jnp.float32)
    b_diff = (bias[1] - bias[0]).reshape(1, 1).astype(jnp.float32)

    # Batch tile: big enough to stream HBM efficiently, small enough that the
    # double-buffered x block stays well under the scoped-VMEM defaults of all
    # generations (1024 x 32 f32 -> 512 KiB lane-padded; x2 buffers ~1 MiB).
    tb = min(block_rows, _round_up(B, 8))
    b_pad = _round_up(B, tb)
    if b_pad != B:
        x = jnp.pad(x, ((0, b_pad - B), (0, 0)))
    grid = (b_pad // tb,)

    out = pl.pallas_call(
        _decoder_kernel,
        out_shape=jax.ShapeDtypeStruct((b_pad, 2), jnp.float32),
        grid_spec=pltpu.PrefetchScalarGridSpec(
            num_scalar_prefetch=0,
            grid=grid,
            in_specs=[
                pl.BlockSpec((tb, S), lambda i: (i, 0)),               # x tile
                pl.BlockSpec((1, S), lambda i: (0, 0)),                # w_diff
                pl.BlockSpec(memory_space=pltpu.MemorySpace.SMEM),     # b_diff scalar
            ],
            out_specs=pl.BlockSpec((tb, 2), lambda i: (i, 0)),
        ),
        compiler_params=pltpu.CompilerParams(
            dimension_semantics=("parallel",)),
        cost_estimate=pl.CostEstimate(
            flops=2 * b_pad * S,
            transcendentals=2 * b_pad,
            bytes_accessed=b_pad * S * 4 + b_pad * 2 * 4 + S * 4),
    )(x, w_diff, b_diff)

    return out[:B]


def reference(x, weight, bias):
    logits = x @ weight + bias[None, :]
    return jax.nn.log_softmax(logits, axis=1)


if __name__ == "__main__":
    STATE_SIZE = 32
    BATCH = 8

    key = jax.random.PRNGKey(0)
    kx, kw, kb, kx2 = jax.random.split(key, 4)

    # Deterministic parameter init mimicking nn.Linear default
    # (uniform in [-1/sqrt(fan_in), 1/sqrt(fan_in)]).
    bound = 1.0 / math.sqrt(STATE_SIZE)
    weight = jax.random.uniform(kw, (STATE_SIZE, 2), jnp.float32,
                                minval=-bound, maxval=bound)
    bias = jax.random.uniform(kb, (2,), jnp.float32,
                              minval=-bound, maxval=bound)

    # Small demo batch.
    x = jax.random.normal(kx, (BATCH, STATE_SIZE), jnp.float32)
    out = jax.block_until_ready(epoct_binary_decoder(x, weight, bias))
    ref = reference(x, weight, bias)
    assert out.shape == (BATCH, 2)
    assert jnp.allclose(out, ref, atol=1e-5, rtol=1e-5), "mismatch vs reference (small batch)"

    # Ragged, multi-tile batch to exercise tiling + padding path.
    B2 = 300
    x2 = jax.random.normal(kx2, (B2, STATE_SIZE), jnp.float32)
    out2 = jax.block_until_ready(epoct_binary_decoder(x2, weight, bias, block_rows=128))
    ref2 = reference(x2, weight, bias)
    assert out2.shape == (B2, 2)
    assert jnp.allclose(out2, ref2, atol=1e-5, rtol=1e-5), "mismatch vs reference (tiled batch)"

    print("KERNEL_OK")
</pallas_src>

<mosaic_0001>
module attributes {stable_mosaic.version = 11 : i64} {
  func.func @_decoder_kernel(%arg0: i32, %arg1: memref<8x32xf32, #tpu.memory_space<vmem>>, %arg2: memref<1x32xf32, #tpu.memory_space<vmem>>, %arg3: memref<1x1xf32, #tpu.memory_space<smem>>, %arg4: memref<8x2xf32, #tpu.memory_space<vmem>>) attributes {dimension_semantics = [#tpu.dimension_semantics<parallel>], iteration_bounds = array<i64: 1>, scalar_prefetch = 0 : i64, scratch_operands = 0 : i64, tpu.core_type = #tpu.core_type<tc>, window_params = [{transform_indices = @transform_0, window_bounds = array<i64: 8, 32>}, {pipeline_mode = #tpu.pipeline_mode<synchronous>, transform_indices = @transform_1, window_bounds = array<i64: 1, 32>}, {transform_indices = @transform_2, window_bounds = array<i64: 1, 1>}, {transform_indices = @transform_3, window_bounds = array<i64: 8, 2>}]} {
    %c0 = arith.constant 0 : index
    %c0_0 = arith.constant 0 : index
    %0 = vector.load %arg1[%c0, %c0_0] : memref<8x32xf32, #tpu.memory_space<vmem>>, vector<8x32xf32>
    %c0_1 = arith.constant 0 : index
    %c0_2 = arith.constant 0 : index
    %1 = vector.load %arg2[%c0_1, %c0_2] : memref<1x32xf32, #tpu.memory_space<vmem>>, vector<1x32xf32>
    %2 = vector.broadcast %1 : vector<1x32xf32> to vector<8x32xf32>
    %3 = arith.mulf %0, %2 : vector<8x32xf32>
    %cst = arith.constant dense<0.000000e+00> : vector<8xf32>
    %4 = vector.multi_reduction <add>, %3, %cst [1] : vector<8x32xf32> to vector<8xf32>
    %5 = vector.shape_cast %4 : vector<8xf32> to vector<8x1xf32>
    %c0_3 = arith.constant 0 : index
    %c0_4 = arith.constant 0 : index
    %6 = memref.load %arg3[%c0_3, %c0_4] : memref<1x1xf32, #tpu.memory_space<smem>>
    %7 = vector.broadcast %6 : f32 to vector<8x1xf32>
    %8 = arith.addf %5, %7 : vector<8x1xf32>
    %cst_5 = arith.constant 0.000000e+00 : f32
    %9 = vector.broadcast %cst_5 : f32 to vector<8x1xf32>
    %10 = arith.maximumf %8, %9 : vector<8x1xf32>
    %11 = math.absf %8 : vector<8x1xf32>
    %cst_6 = arith.constant 0.000000e+00 : f32
    %12 = vector.broadcast %cst_6 : f32 to vector<8x1xf32>
    %13 = arith.subf %12, %11 : vector<8x1xf32>
    %14 = math.exp %13 : vector<8x1xf32>
    %15 = math.log1p %14 : vector<8x1xf32>
    %16 = arith.addf %10, %15 : vector<8x1xf32>
    %cst_7 = arith.constant 0.000000e+00 : f32
    %17 = vector.broadcast %cst_7 : f32 to vector<8x1xf32>
    %18 = arith.subf %17, %16 : vector<8x1xf32>
    %19 = arith.subf %8, %16 : vector<8x1xf32>
    %20 = tpu.concatenate %18, %19 in 1 : vector<8x1xf32>, vector<8x1xf32> -> vector<8x2xf32>
    %c0_8 = arith.constant 0 : index
    %c0_9 = arith.constant 0 : index
    %21 = vector.load %arg4[%c0_8, %c0_9] : memref<8x2xf32, #tpu.memory_space<vmem>>, vector<8x2xf32>
    tpu.vector_store %arg4[%c0_8, %c0_9], %20 {strides = array<i32>} : memref<8x2xf32, #tpu.memory_space<vmem>>, vector<8x2xf32>,
    return
  }
  func.func @transform_0(%arg0: i32) -> (i32, i32) {
    %c0_i32 = arith.constant 0 : i32
    %c0_i32_0 = arith.constant 0 : i32
    return %arg0, %c0_i32 : i32, i32
  }
  func.func @transform_1(%arg0: i32) -> (i32, i32) {
    %c0_i32 = arith.constant 0 : i32
    %c0_i32_0 = arith.constant 0 : i32
    %c0_i32_1 = arith.constant 0 : i32
    return %c0_i32, %c0_i32_0 : i32, i32
  }
  func.func @transform_2(%arg0: i32) -> (i32, i32) {
    %c0_i32 = arith.constant 0 : i32
    %c0_i32_0 = arith.constant 0 : i32
    %c0_i32_1 = arith.constant 0 : i32
    return %c0_i32, %c0_i32_0 : i32, i32
  }
  func.func @transform_3(%arg0: i32) -> (i32, i32) {
    %c0_i32 = arith.constant 0 : i32
    %c0_i32_0 = arith.constant 0 : i32
    return %arg0, %c0_i32 : i32, i32
  }
}

</mosaic_0001>

<llo_original>
// kernel: tpu_custom_call.1
$region0: #{tpu_custom_call.1}
  #allocation0 [shape = 'u32[]', space=smem, size = 0x4, offset = 0x4, fixed_abs, tag = 'smem constant byte address 0x4 - core index']
  #allocation1 [shape = 'u32[72,128]{1,0:T(1,128)}', space=vmem, size = 0x9000, scoped, tag = 'internal scratch']
  #allocation2 [shape = 'f32[1,1]{1,0:T(1,128)S(6)}', space=smem, size = 0x200, scoped, tag = 'scoped memory for tpu_custom_call.1']
  %s0 = inlined_call_operand.hbm [shape: f32[8,32], index: 0, kind: input, shape index: {}]
  %s1 = inlined_call_operand.vmem [shape: f32[1,32], index: 1, kind: input, shape index: {}]
  %s2 = inlined_call_operand.<no memory space> [shape: f32[1,1], index: 2, kind: input, shape index: {}]
  %s3 = inlined_call_operand.vmem [shape: f32[8,2], index: 3, kind: output, shape index: {}]
  %s4 = sld [smem:[#allocation0]]
  $region26: #{tpu_custom_call.1} parent=0
    _
  %s6 = ssub.s32 1, %s4
  %s7 = scalar_select 0, %s6, %s4
  %8 = sst [smem:[#allocation2]] %s2
  $region1: #{tpu_custom_call.1} parent=0
    #allocation3 [shape = 'u8[4096]{0}', space=vmem, size = 0x1000, scoped, tag = 'input window, operand 0, single buffered']
    #allocation4 [shape = 's32[1]{0}', space=sflag, size = 0x4, scoped, tag = 'scoped memory for tpu_custom_call.1']
    %9 = vsyncpa [#allocation4], 0
    // Predicated region
    $region2: #{tpu_custom_call.1} parent=1 // pred_check
      _
    $region3: #{tpu_custom_call.1} parent=1 // pred_check_branch
      %11 = sbr.rel (0) target = $region5
    $region4: #{tpu_custom_call.1} parent=1 // pred_region
      %13 = vsyncadd [#allocation4], 0
      %s15 = sshll.u32 %s0, 4
      %s16 = int_to_ptr.hbm [resolvable:$true] %s15
      %s17 = sshll.u32 [#allocation3], 4
      %s18 = int_to_ptr.vmem [resolvable:$true] %s17
      %20 = dma.hbm_to_vmem [thread:$0]  %s16, 128, %s18, [#allocation4]
    $region5: #{tpu_custom_call.1} parent=1 // pred_fallthru
      _
    // Predicated region
    $region6: #{tpu_custom_call.1} parent=1 // pred_check
      _
    $region7: #{tpu_custom_call.1} parent=1 // pred_check_branch
      %22 = sbr.rel (0) target = $region9
    $region8: #{tpu_custom_call.1} parent=1 // pred_region
      _
    $region9: #{tpu_custom_call.1} parent=1 // pred_fallthru
      _
    // Predicated region
    $region10: #{tpu_custom_call.1} parent=1 // pred_check
      _
    $region11: #{tpu_custom_call.1} parent=1 // pred_check_branch
      %24 = sbr.rel (0) target = $region13
    $region12: #{tpu_custom_call.1} parent=1 // pred_region
      _
    $region13: #{tpu_custom_call.1} parent=1 // pred_fallthru
      _
    // Predicated region
    $region14: #{tpu_custom_call.1} parent=1 // pred_check
      _
    $region15: #{tpu_custom_call.1} parent=1 // pred_check_branch
      %26 = sbr.rel (0) target = $region17
    $region16: #{tpu_custom_call.1} parent=1 // pred_region
      %28 = dma.done [#allocation4], 128
    $region17: #{tpu_custom_call.1} parent=1 // pred_fallthru
      _
    %v29 = vld [vmem:[#allocation3] sm:$0xff]
    %v30 = vld [vmem:[%s1] sm:$0x1]
    %v32 = vperm.slane %v30, 0
    %v34 = vmul.f32 %v29, %v32
    %vm35 = vcmask 261120
    %v36 = vsel %vm35, %v34, 0.0
    %37 = vadd.xlane.f32.xlu0 %v36
    %v38 = vpop.xlane.xlu0 %37
    %s39 = sld [smem:[#allocation2]]
    %v40 = vstv %s39
    %v41 = vadd.f32 %v38, %v40
    %v42 = vmax.f32 %v41, 0.0
    %v43 = vand.u32 2147483647, %v41
    %v44 = vsub.f32 0.0, %v43
    %v45 = vmul.f32 %v44, 1.442695
    %v46 = vpow.pop %v45
    %v47 = vadd.f32 %v46, 1.0
    %v48 = vlog2.pop %v47
    %v49 = vmul.f32 %v48, 0.6931472
    %v50 = vmul.f32 -0.5, %v46
    %v51 = vadd.f32 %v50, 1.0
    %v52 = vmul.f32 %v51, %v46
    %v53 = vand.u32 2147483647, %v46
    %vm54 = vcmp.lt.f32.partialorder %v53, 0.0004427343
    %v55 = vsel %vm54, %v52, %v49
    %v56 = vadd.f32 %v42, %v55
    %v57 = vsub.f32 0.0, %v56
    %v58 = vsub.f32 %v41, %v56
    %vm59 = vcmask 7168
    %v60 = vsel %vm59, %v57, %v58
    %vm61 = vcmask 15360
    %62 = vst.msk [vmem:[%s3] sm:$0xff] %vm61, %v60
    // Predicated region
    $region18: #{tpu_custom_call.1} parent=1 // pred_check
      _
    $region19: #{tpu_custom_call.1} parent=1 // pred_check_branch
      %64 = sbr.rel (0) target = $region21
    $region20: #{tpu_custom_call.1} parent=1 // pred_region
      _
    $region21: #{tpu_custom_call.1} parent=1 // pred_fallthru
      _
    // Predicated region
    $region22: #{tpu_custom_call.1} parent=1 // pred_check
      _
    $region23: #{tpu_custom_call.1} parent=1 // pred_check_branch
      %66 = sbr.rel (0) target = $region25
    $region24: #{tpu_custom_call.1} parent=1 // pred_region
      _
    $region25: #{tpu_custom_call.1} parent=1 // pred_fallthru
      _
    %67 = vsyncpa [#allocation4], 1

</llo_original>
